<compile_context>
chip_gen: v5e
topology: v5e:2x2
jax: 0.10.0
libtpu: 0.0.40
codegen_flags: <defaults>
</compile_context>

<pallas_src>
import math

import jax
import jax.numpy as jnp
from jax.experimental import pallas as pl
from jax.experimental.pallas import tpu as pltpu


def _round_up(x: int, m: int) -> int:
    return (x + m - 1) // m * m


def _cdiv(a: int, b: int) -> int:
    return -(-a // b)


def _batch_tiling(B: int, tm_max: int = 512):
    """Pick the batch tile (rows per grid step) and the grid size.

    Tiles are multiples of 8 sublanes (or the full batch when tiny).  For
    B > 8 we prefer >= 2 tiles so the batch axis can shard across both v7x
    TensorCores, capped at tm_max rows so x/out DMAs stay large but VMEM-safe.
    """
    if B <= 8:
        return B, 1
    tm = min(tm_max, _round_up((B + 1) // 2, 8))
    return tm, _cdiv(B, tm)


# ----------------------------------------------------------------------------
# Pallas kernel: fused 3-layer MLP  relu(xW1+b1) -> relu(.W2+b2) -> .W3+b3
# x arrives f32 and is cast to bf16 in-kernel; matmuls are bf16 operands with
# f32 accumulation; bias add + ReLU stay f32 on the VPU; output stored bf16.
# ----------------------------------------------------------------------------
def _dqn_kernel(x_ref, w1_ref, b1_ref, w2_ref, b2_ref, w3_ref, b3_ref, o_ref):
    x = x_ref[...].astype(jnp.bfloat16)                              # (TM, S)
    h1 = jnp.dot(x, w1_ref[...], preferred_element_type=jnp.float32)
    h1 = jnp.maximum(h1 + b1_ref[...], 0.0)                          # (TM, 128) f32

    h2 = jnp.dot(h1.astype(jnp.bfloat16), w2_ref[...],
                 preferred_element_type=jnp.float32)
    h2 = jnp.maximum(h2 + b2_ref[...], 0.0)                          # (TM, 128) f32

    out = jnp.dot(h2.astype(jnp.bfloat16), w3_ref[...],
                  preferred_element_type=jnp.float32)
    o_ref[...] = (out + b3_ref[...]).astype(o_ref.dtype)             # lane-dense bf16 store


# ----------------------------------------------------------------------------
# Wrapper: pad the tiny weights (zeros keep the math exact), tile the batch,
# slice back to (B, A) f32.
# ----------------------------------------------------------------------------
def dqn_forward(x, w1, b1, w2, b2, w3, b3, *, tm_max=512):
    """x: (B, S) f32.  Weights stored (in, out), biases (1, out).  Returns (B, A) f32."""
    B, S = x.shape
    H1 = w1.shape[1]
    H2 = w2.shape[1]
    A = w3.shape[1]

    H1p = _round_up(max(H1, 128), 128)
    H2p = _round_up(max(H2, 128), 128)
    Ap = _round_up(max(A, 128), 128)   # lane-dense output width

    # Tiny weight/bias pads (~80 KB total) — zero padding is mathematically inert.
    w1_p = jnp.zeros((S, H1p), jnp.float32).at[:, :H1].set(w1).astype(jnp.bfloat16)
    b1_p = jnp.zeros((1, H1p), jnp.float32).at[:, :H1].set(b1)
    w2_p = jnp.zeros((H1p, H2p), jnp.float32).at[:H1, :H2].set(w2).astype(jnp.bfloat16)
    b2_p = jnp.zeros((1, H2p), jnp.float32).at[:, :H2].set(b2)
    w3_p = jnp.zeros((H2p, Ap), jnp.float32).at[:H2, :A].set(w3).astype(jnp.bfloat16)
    b3_p = jnp.zeros((1, Ap), jnp.float32).at[:, :A].set(b3)

    tm, grid_b = _batch_tiling(B, tm_max)

    def resident(a):
        # Block == full array, same block every grid step → stays resident in VMEM.
        return pl.BlockSpec(a.shape, lambda i: (0, 0))

    out_p = pl.pallas_call(
        _dqn_kernel,
        out_shape=jax.ShapeDtypeStruct((B, Ap), jnp.bfloat16),
        grid=(grid_b,),
        in_specs=[
            pl.BlockSpec((tm, S), lambda i: (i, 0)),   # x: tiled over batch, no S pad
            resident(w1_p), resident(b1_p),
            resident(w2_p), resident(b2_p),
            resident(w3_p), resident(b3_p),
        ],
        out_specs=pl.BlockSpec((tm, Ap), lambda i: (i, 0)),
        compiler_params=pltpu.CompilerParams(
            dimension_semantics=("parallel",)),
    )(x, w1_p, b1_p, w2_p, b2_p, w3_p, b3_p)

    return out_p[:, :A].astype(jnp.float32)


# ----------------------------------------------------------------------------
# Deterministic parameter construction (PyTorch nn.Linear default init),
# weights stored as (in_features, out_features) for x @ W.
# ----------------------------------------------------------------------------
def _linear_params(key, in_f, out_f):
    kw, kb = jax.random.split(key)
    bound = 1.0 / math.sqrt(in_f)
    w = jax.random.uniform(kw, (in_f, out_f), jnp.float32, -bound, bound)
    b = jax.random.uniform(kb, (1, out_f), jnp.float32, -bound, bound)
    return w, b


def make_dqn_params(key, state_size, action_size, fc1_units=64, fc2_units=64):
    k1, k2, k3 = jax.random.split(key, 3)
    w1, b1 = _linear_params(k1, state_size, fc1_units)
    w2, b2 = _linear_params(k2, fc1_units, fc2_units)
    w3, b3 = _linear_params(k3, fc2_units, action_size)
    return (w1, b1, w2, b2, w3, b3)


# ----------------------------------------------------------------------------
if __name__ == "__main__":
    STATE_SIZE = 16
    ACTION_SIZE = 8
    BATCH = 8

    key = jax.random.PRNGKey(0)
    k_params, k_x = jax.random.split(key)
    params = make_dqn_params(k_params, STATE_SIZE, ACTION_SIZE)
    x = jax.random.normal(k_x, (BATCH, STATE_SIZE), jnp.float32)

    dqn_fn = jax.jit(dqn_forward)
    q = dqn_fn(x, *params)
    q = jax.block_until_ready(q)

    # Reference in plain JAX, mirroring the kernel's bf16-operand / f32-accum /
    # bf16-store numerics.
    w1, b1, w2, b2, w3, b3 = params
    xb = x.astype(jnp.bfloat16)
    h = jnp.maximum(
        jnp.dot(xb, w1.astype(jnp.bfloat16), preferred_element_type=jnp.float32) + b1, 0.0)
    h = jnp.maximum(
        jnp.dot(h.astype(jnp.bfloat16), w2.astype(jnp.bfloat16),
                preferred_element_type=jnp.float32) + b2, 0.0)
    q_ref = jnp.dot(h.astype(jnp.bfloat16), w3.astype(jnp.bfloat16),
                    preferred_element_type=jnp.float32) + b3
    q_ref = q_ref.astype(jnp.bfloat16).astype(jnp.float32)

    assert q.shape == (BATCH, ACTION_SIZE)
    assert jnp.allclose(q, q_ref, atol=2e-2, rtol=2e-2), (
        f"max abs err {jnp.max(jnp.abs(q - q_ref))}")

    print("KERNEL_OK")
</pallas_src>

<mosaic_0001>
module attributes {stable_mosaic.version = 11 : i64} {
  func.func @_dqn_kernel(%arg0: i32, %arg1: memref<8x16xf32, #tpu.memory_space<vmem>>, %arg2: memref<16x128xbf16, #tpu.memory_space<vmem>>, %arg3: memref<1x128xf32, #tpu.memory_space<vmem>>, %arg4: memref<128x128xbf16, #tpu.memory_space<vmem>>, %arg5: memref<1x128xf32, #tpu.memory_space<vmem>>, %arg6: memref<128x128xbf16, #tpu.memory_space<vmem>>, %arg7: memref<1x128xf32, #tpu.memory_space<vmem>>, %arg8: memref<8x128xbf16, #tpu.memory_space<vmem>>) attributes {dimension_semantics = [#tpu.dimension_semantics<parallel>], iteration_bounds = array<i64: 1>, scalar_prefetch = 0 : i64, scratch_operands = 0 : i64, tpu.core_type = #tpu.core_type<tc>, window_params = [{transform_indices = @transform_0, window_bounds = array<i64: 8, 16>}, {pipeline_mode = #tpu.pipeline_mode<synchronous>, transform_indices = @transform_1, window_bounds = array<i64: 16, 128>}, {pipeline_mode = #tpu.pipeline_mode<synchronous>, transform_indices = @transform_2, window_bounds = array<i64: 1, 128>}, {pipeline_mode = #tpu.pipeline_mode<synchronous>, transform_indices = @transform_3, window_bounds = array<i64: 128, 128>}, {pipeline_mode = #tpu.pipeline_mode<synchronous>, transform_indices = @transform_4, window_bounds = array<i64: 1, 128>}, {pipeline_mode = #tpu.pipeline_mode<synchronous>, transform_indices = @transform_5, window_bounds = array<i64: 128, 128>}, {pipeline_mode = #tpu.pipeline_mode<synchronous>, transform_indices = @transform_6, window_bounds = array<i64: 1, 128>}, {transform_indices = @transform_7, window_bounds = array<i64: 8, 128>}]} {
    %c0 = arith.constant 0 : index
    %c0_0 = arith.constant 0 : index
    %0 = vector.load %arg1[%c0, %c0_0] : memref<8x16xf32, #tpu.memory_space<vmem>>, vector<8x16xf32>
    %1 = arith.truncf %0 : vector<8x16xf32> to vector<8x16xbf16>
    %c0_1 = arith.constant 0 : index
    %c0_2 = arith.constant 0 : index
    %2 = vector.load %arg2[%c0_1, %c0_2] : memref<16x128xbf16, #tpu.memory_space<vmem>>, vector<16x128xbf16>
    %cst = arith.constant dense<0.000000e+00> : vector<8x128xf32>
    %3 = tpu.matmul %1, %2, %cst {dimension_numbers = #tpu.dot_dimension_numbers<[1], [0], [0], [1], [0, 0, 1, 1], [], []>} : vector<8x16xbf16>, vector<16x128xbf16>, vector<8x128xf32> -> vector<8x128xf32>
    %c0_3 = arith.constant 0 : index
    %c0_4 = arith.constant 0 : index
    %4 = vector.load %arg3[%c0_3, %c0_4] : memref<1x128xf32, #tpu.memory_space<vmem>>, vector<1x128xf32>
    %5 = vector.broadcast %4 : vector<1x128xf32> to vector<8x128xf32>
    %6 = arith.addf %3, %5 : vector<8x128xf32>
    %cst_5 = arith.constant 0.000000e+00 : f32
    %7 = vector.broadcast %cst_5 : f32 to vector<8x128xf32>
    %8 = arith.maximumf %6, %7 : vector<8x128xf32>
    %9 = arith.truncf %8 : vector<8x128xf32> to vector<8x128xbf16>
    %c0_6 = arith.constant 0 : index
    %c0_7 = arith.constant 0 : index
    %10 = vector.load %arg4[%c0_6, %c0_7] : memref<128x128xbf16, #tpu.memory_space<vmem>>, vector<128x128xbf16>
    %cst_8 = arith.constant dense<0.000000e+00> : vector<8x128xf32>
    %11 = tpu.matmul %9, %10, %cst_8 {dimension_numbers = #tpu.dot_dimension_numbers<[1], [0], [0], [1], [0, 0, 1, 1], [], []>} : vector<8x128xbf16>, vector<128x128xbf16>, vector<8x128xf32> -> vector<8x128xf32>
    %c0_9 = arith.constant 0 : index
    %c0_10 = arith.constant 0 : index
    %12 = vector.load %arg5[%c0_9, %c0_10] : memref<1x128xf32, #tpu.memory_space<vmem>>, vector<1x128xf32>
    %13 = vector.broadcast %12 : vector<1x128xf32> to vector<8x128xf32>
    %14 = arith.addf %11, %13 : vector<8x128xf32>
    %cst_11 = arith.constant 0.000000e+00 : f32
    %15 = vector.broadcast %cst_11 : f32 to vector<8x128xf32>
    %16 = arith.maximumf %14, %15 : vector<8x128xf32>
    %17 = arith.truncf %16 : vector<8x128xf32> to vector<8x128xbf16>
    %c0_12 = arith.constant 0 : index
    %c0_13 = arith.constant 0 : index
    %18 = vector.load %arg6[%c0_12, %c0_13] : memref<128x128xbf16, #tpu.memory_space<vmem>>, vector<128x128xbf16>
    %cst_14 = arith.constant dense<0.000000e+00> : vector<8x128xf32>
    %19 = tpu.matmul %17, %18, %cst_14 {dimension_numbers = #tpu.dot_dimension_numbers<[1], [0], [0], [1], [0, 0, 1, 1], [], []>} : vector<8x128xbf16>, vector<128x128xbf16>, vector<8x128xf32> -> vector<8x128xf32>
    %c0_15 = arith.constant 0 : index
    %c0_16 = arith.constant 0 : index
    %20 = vector.load %arg7[%c0_15, %c0_16] : memref<1x128xf32, #tpu.memory_space<vmem>>, vector<1x128xf32>
    %21 = vector.broadcast %20 : vector<1x128xf32> to vector<8x128xf32>
    %22 = arith.addf %19, %21 : vector<8x128xf32>
    %23 = arith.truncf %22 : vector<8x128xf32> to vector<8x128xbf16>
    %c0_17 = arith.constant 0 : index
    %c0_18 = arith.constant 0 : index
    %24 = vector.load %arg8[%c0_17, %c0_18] : memref<8x128xbf16, #tpu.memory_space<vmem>>, vector<8x128xbf16>
    tpu.vector_store %arg8[%c0_17, %c0_18], %23 {strides = array<i32>} : memref<8x128xbf16, #tpu.memory_space<vmem>>, vector<8x128xbf16>,
    return
  }
  func.func @transform_0(%arg0: i32) -> (i32, i32) {
    %c0_i32 = arith.constant 0 : i32
    %c0_i32_0 = arith.constant 0 : i32
    return %arg0, %c0_i32 : i32, i32
  }
  func.func @transform_1(%arg0: i32) -> (i32, i32) {
    %c0_i32 = arith.constant 0 : i32
    %c0_i32_0 = arith.constant 0 : i32
    %c0_i32_1 = arith.constant 0 : i32
    return %c0_i32, %c0_i32_0 : i32, i32
  }
  func.func @transform_2(%arg0: i32) -> (i32, i32) {
    %c0_i32 = arith.constant 0 : i32
    %c0_i32_0 = arith.constant 0 : i32
    %c0_i32_1 = arith.constant 0 : i32
    return %c0_i32, %c0_i32_0 : i32, i32
  }
  func.func @transform_3(%arg0: i32) -> (i32, i32) {
    %c0_i32 = arith.constant 0 : i32
    %c0_i32_0 = arith.constant 0 : i32
    %c0_i32_1 = arith.constant 0 : i32
    return %c0_i32, %c0_i32_0 : i32, i32
  }
  func.func @transform_4(%arg0: i32) -> (i32, i32) {
    %c0_i32 = arith.constant 0 : i32
    %c0_i32_0 = arith.constant 0 : i32
    %c0_i32_1 = arith.constant 0 : i32
    return %c0_i32, %c0_i32_0 : i32, i32
  }
  func.func @transform_5(%arg0: i32) -> (i32, i32) {
    %c0_i32 = arith.constant 0 : i32
    %c0_i32_0 = arith.constant 0 : i32
    %c0_i32_1 = arith.constant 0 : i32
    return %c0_i32, %c0_i32_0 : i32, i32
  }
  func.func @transform_6(%arg0: i32) -> (i32, i32) {
    %c0_i32 = arith.constant 0 : i32
    %c0_i32_0 = arith.constant 0 : i32
    %c0_i32_1 = arith.constant 0 : i32
    return %c0_i32, %c0_i32_0 : i32, i32
  }
  func.func @transform_7(%arg0: i32) -> (i32, i32) {
    %c0_i32 = arith.constant 0 : i32
    %c0_i32_0 = arith.constant 0 : i32
    return %arg0, %c0_i32 : i32, i32
  }
}

</mosaic_0001>

<llo_original>
// kernel: dqn_forward.1
$region0: #{dqn_forward.1}
  #allocation0 [shape = 'u32[]', space=smem, size = 0x4, offset = 0x4, fixed_abs, tag = 'smem constant byte address 0x4 - core index']
  #allocation1 [shape = 'u32[72,128]{1,0:T(1,128)}', space=vmem, size = 0x9000, scoped, tag = 'internal scratch']
  %s0 = inlined_call_operand.vmem [shape: f32[8,16], index: 0, kind: input, shape index: {}]
  %s1 = inlined_call_operand.vmem [shape: bf16[16,128], index: 1, kind: input, shape index: {}]
  %s2 = inlined_call_operand.vmem [shape: f32[1,128], index: 2, kind: input, shape index: {}]
  %s3 = inlined_call_operand.vmem [shape: bf16[128,128], index: 3, kind: input, shape index: {}]
  %s4 = inlined_call_operand.vmem [shape: f32[1,128], index: 4, kind: input, shape index: {}]
  %s5 = inlined_call_operand.vmem [shape: bf16[128,128], index: 5, kind: input, shape index: {}]
  %s6 = inlined_call_operand.vmem [shape: f32[1,128], index: 6, kind: input, shape index: {}]
  %s7 = inlined_call_operand.vmem [shape: bf16[8,128], index: 7, kind: output, shape index: {}]
  %s8 = sld [smem:[#allocation0]]
  $region38: #{dqn_forward.1} parent=0
    _
  %s10 = ssub.s32 1, %s8
  %s11 = scalar_select 0, %s10, %s8
  // Predicated region
  $region2: #{dqn_forward.1} parent=0 // pred_check
    _
  $region3: #{dqn_forward.1} parent=0 // pred_check_branch
    %13 = sbr.rel (0) target = $region5
  $region4: #{dqn_forward.1} parent=0 // pred_region
    _
  $region5: #{dqn_forward.1} parent=0 // pred_fallthru
    _
  // Predicated region
  $region6: #{dqn_forward.1} parent=0 // pred_check
    _
  $region7: #{dqn_forward.1} parent=0 // pred_check_branch
    %15 = sbr.rel (0) target = $region9
  $region8: #{dqn_forward.1} parent=0 // pred_region
    _
  $region9: #{dqn_forward.1} parent=0 // pred_fallthru
    _
  // Predicated region
  $region10: #{dqn_forward.1} parent=0 // pred_check
    _
  $region11: #{dqn_forward.1} parent=0 // pred_check_branch
    %17 = sbr.rel (0) target = $region13
  $region12: #{dqn_forward.1} parent=0 // pred_region
    _
  $region13: #{dqn_forward.1} parent=0 // pred_fallthru
    _
  // Predicated region
  $region14: #{dqn_forward.1} parent=0 // pred_check
    _
  $region15: #{dqn_forward.1} parent=0 // pred_check_branch
    %19 = sbr.rel (0) target = $region17
  $region16: #{dqn_forward.1} parent=0 // pred_region
    _
  $region17: #{dqn_forward.1} parent=0 // pred_fallthru
    _
  // Predicated region
  $region18: #{dqn_forward.1} parent=0 // pred_check
    _
  $region19: #{dqn_forward.1} parent=0 // pred_check_branch
    %21 = sbr.rel (0) target = $region21
  $region20: #{dqn_forward.1} parent=0 // pred_region
    _
  $region21: #{dqn_forward.1} parent=0 // pred_fallthru
    _
  // Predicated region
  $region22: #{dqn_forward.1} parent=0 // pred_check
    _
  $region23: #{dqn_forward.1} parent=0 // pred_check_branch
    %23 = sbr.rel (0) target = $region25
  $region24: #{dqn_forward.1} parent=0 // pred_region
    _
  $region25: #{dqn_forward.1} parent=0 // pred_fallthru
    _
  // Predicated region
  $region26: #{dqn_forward.1} parent=0 // pred_check
    _
  $region27: #{dqn_forward.1} parent=0 // pred_check_branch
    %25 = sbr.rel (0) target = $region29
  $region28: #{dqn_forward.1} parent=0 // pred_region
    _
  $region29: #{dqn_forward.1} parent=0 // pred_fallthru
    _
  %v27 = vld [vmem:[%s0] sm:$0xff]
  %v28 = vpack.c.bf16 %v27, %v27
  %v29 = vld [vmem:[%s1] sm:$0xf]
  %v30 = vld [vmem:[%s1 + $0x4] sm:$0xf]
  %v31 = vld [vmem:[%s2] sm:$0x1]
  %v33 = vperm.slane %v31, 0
  %v37 = vunpack.c.l.b16 %v29
  %v38 = vunpack.c.l.b16 %v30
  %v39 = vpack.c.b16 %v38, %v37
  %vm41 = vcmask 130048
  %v43 = vsel %vm41, %v28, 0
  %45 = vmatpush.bf16.msra.mxu0 0
  %46 = vmatpush.bf16.msra.mxu0 0
  %47 = vmatpush.bf16.msra.mxu0 0
  %48 = vmatpush.bf16.msra.mxu0 0
  %49 = vmatpush.bf16.msra.mxu0 0
  %50 = vmatpush.bf16.msra.mxu0 0
  %51 = vmatpush.bf16.msra.mxu0 0
  %52 = vmatpush.bf16.msra.mxu0 %v39
  %53 = vmatmul.bf16.gmra.mxu0 %v43
  %v54 = vpop.f32.mrf.mxu0
  %v55 = vadd.f32 %v33, %v54
  %v56 = vpop.f32.mrf.mxu0
  %57 = vdwg.mxu0
  %v58 = vmax.f32 %v55, 0.0
  %v59 = vpack.c.bf16 %v58, %v58
  %v60 = vld [vmem:[%s3] sm:$0xf]
  %v61 = vld [vmem:[%s3 + $0x4] sm:$0xf]
  %v62 = vld [vmem:[%s3 + $0x8] sm:$0xf]
  %v63 = vld [vmem:[%s3 + $0xc] sm:$0xf]
  %v64 = vld [vmem:[%s3 + $0x10] sm:$0xf]
  %v65 = vld [vmem:[%s3 + $0x14] sm:$0xf]
  %v66 = vld [vmem:[%s3 + $0x18] sm:$0xf]
  %v67 = vld [vmem:[%s3 + $0x1c] sm:$0xf]
  %v68 = vld [vmem:[%s3 + $0x20] sm:$0xf]
  %v69 = vld [vmem:[%s3 + $0x24] sm:$0xf]
  %v70 = vld [vmem:[%s3 + $0x28] sm:$0xf]
  %v71 = vld [vmem:[%s3 + $0x2c] sm:$0xf]
  %v72 = vld [vmem:[%s3 + $0x30] sm:$0xf]
  %v73 = vld [vmem:[%s3 + $0x34] sm:$0xf]
  %v74 = vld [vmem:[%s3 + $0x38] sm:$0xf]
  %v75 = vld [vmem:[%s3 + $0x3c] sm:$0xf]
  %v76 = vld [vmem:[%s4] sm:$0x1]
  %v78 = vperm.slane %v76, 0
  %v96 = vunpack.c.l.b16 %v60
  %v97 = vunpack.c.l.b16 %v61
  %v98 = vunpack.c.l.b16 %v62
  %v99 = vunpack.c.l.b16 %v63
  %v100 = vunpack.c.l.b16 %v64
  %v101 = vunpack.c.l.b16 %v65
  %v102 = vunpack.c.l.b16 %v66
  %v103 = vunpack.c.l.b16 %v67
  %v104 = vunpack.c.l.b16 %v68
  %v105 = vunpack.c.l.b16 %v69
  %v106 = vunpack.c.l.b16 %v70
  %v107 = vunpack.c.l.b16 %v71
  %v108 = vunpack.c.l.b16 %v72
  %v109 = vunpack.c.l.b16 %v73
  %v110 = vunpack.c.l.b16 %v74
  %v111 = vunpack.c.l.b16 %v75
  %v112 = vpack.c.b16 %v97, %v96
  %v113 = vpack.c.b16 %v99, %v98
  %v114 = vpack.c.b16 %v101, %v100
  %v115 = vpack.c.b16 %v103, %v102
  %v116 = vpack.c.b16 %v105, %v104
  %v117 = vpack.c.b16 %v107, %v106
  %v118 = vpack.c.b16 %v109, %v108
  %v119 = vpack.c.b16 %v111, %v110
  %128 = vmatpush.bf16.msra.mxu0 %v119
  %129 = vmatpush.bf16.msra.mxu0 %v118
  %130 = vmatpush.bf16.msra.mxu0 %v117
  %131 = vmatpush.bf16.msra.mxu0 %v116
  %132 = vmatpush.bf16.msra.mxu0 %v115
  %133 = vmatpush.bf16.msra.mxu0 %v114
  %134 = vmatpush.bf16.msra.mxu0 %v113
  %135 = vmatpush.bf16.msra.mxu0 %v112
  %136 = vmatmul.bf16.gmra.mxu0 %v59
  %v137 = vpop.f32.mrf.mxu0
  %v138 = vadd.f32 %v78, %v137
  %v139 = vpop.f32.mrf.mxu0
  %140 = vdwg.mxu0
  %v141 = vmax.f32 %v138, 0.0
  %v142 = vpack.c.bf16 %v141, %v141
  %v143 = vld [vmem:[%s5] sm:$0xf]
  %v144 = vld [vmem:[%s5 + $0x4] sm:$0xf]
  %v145 = vld [vmem:[%s5 + $0x8] sm:$0xf]
  %v146 = vld [vmem:[%s5 + $0xc] sm:$0xf]
  %v147 = vld [vmem:[%s5 + $0x10] sm:$0xf]
  %v148 = vld [vmem:[%s5 + $0x14] sm:$0xf]
  %v149 = vld [vmem:[%s5 + $0x18] sm:$0xf]
  %v150 = vld [vmem:[%s5 + $0x1c] sm:$0xf]
  %v151 = vld [vmem:[%s5 + $0x20] sm:$0xf]
  %v152 = vld [vmem:[%s5 + $0x24] sm:$0xf]
  %v153 = vld [vmem:[%s5 + $0x28] sm:$0xf]
  %v154 = vld [vmem:[%s5 + $0x2c] sm:$0xf]
  %v155 = vld [vmem:[%s5 + $0x30] sm:$0xf]
  %v156 = vld [vmem:[%s5 + $0x34] sm:$0xf]
  %v157 = vld [vmem:[%s5 + $0x38] sm:$0xf]
  %v158 = vld [vmem:[%s5 + $0x3c] sm:$0xf]
  %v159 = vld [vmem:[%s6] sm:$0x1]
  %v161 = vperm.slane %v159, 0
  %v179 = vunpack.c.l.b16 %v143
  %v180 = vunpack.c.l.b16 %v144
  %v181 = vunpack.c.l.b16 %v145
  %v182 = vunpack.c.l.b16 %v146
  %v183 = vunpack.c.l.b16 %v147
  %v184 = vunpack.c.l.b16 %v148
  %v185 = vunpack.c.l.b16 %v149
  %v186 = vunpack.c.l.b16 %v150
  %v187 = vunpack.c.l.b16 %v151
  %v188 = vunpack.c.l.b16 %v152
  %v189 = vunpack.c.l.b16 %v153
  %v190 = vunpack.c.l.b16 %v154
  %v191 = vunpack.c.l.b16 %v155
  %v192 = vunpack.c.l.b16 %v156
  %v193 = vunpack.c.l.b16 %v157
  %v194 = vunpack.c.l.b16 %v158
  %v195 = vpack.c.b16 %v180, %v179
  %v196 = vpack.c.b16 %v182, %v181
  %v197 = vpack.c.b16 %v184, %v183
  %v198 = vpack.c.b16 %v186, %v185
  %v199 = vpack.c.b16 %v188, %v187
  %v200 = vpack.c.b16 %v190, %v189
  %v201 = vpack.c.b16 %v192, %v191
  %v202 = vpack.c.b16 %v194, %v193
  %211 = vmatpush.bf16.msra.mxu0 %v202
  %212 = vmatpush.bf16.msra.mxu0 %v201
  %213 = vmatpush.bf16.msra.mxu0 %v200
  %214 = vmatpush.bf16.msra.mxu0 %v199
  %215 = vmatpush.bf16.msra.mxu0 %v198
  %216 = vmatpush.bf16.msra.mxu0 %v197
  %217 = vmatpush.bf16.msra.mxu0 %v196
  %218 = vmatpush.bf16.msra.mxu0 %v195
  %219 = vmatmul.bf16.gmra.mxu0 %v142
  %v220 = vpop.f32.mrf.mxu0
  %v221 = vadd.f32 %v161, %v220
  %v222 = vpop.f32.mrf.mxu0
  %223 = vdwg.mxu0
  %v224 = vpack.c.bf16 %v221, %v221
  %225 = vst [vmem:[%s7] sm:$0xf] %v224
  // Predicated region
  $region30: #{dqn_forward.1} parent=0 // pred_check
    _
  $region31: #{dqn_forward.1} parent=0 // pred_check_branch
    %227 = sbr.rel (0) target = $region33
  $region32: #{dqn_forward.1} parent=0 // pred_region
    _
  $region33: #{dqn_forward.1} parent=0 // pred_fallthru
    _
  // Predicated region
  $region34: #{dqn_forward.1} parent=0 // pred_check
    _
  $region35: #{dqn_forward.1} parent=0 // pred_check_branch
    %229 = sbr.rel (0) target = $region37
  $region36: #{dqn_forward.1} parent=0 // pred_region
    _
  $region37: #{dqn_forward.1} parent=0 // pred_fallthru
    _

</llo_original>
